<compile_context>
chip_gen: v7x
topology: tpu7x:2x2x1
jax: 0.10.0
libtpu: 0.0.40
codegen_flags: <defaults>
</compile_context>

<pallas_src>
import functools

import jax
import jax.numpy as jnp
from jax.experimental import pallas as pl
from jax.experimental.pallas import tpu as pltpu


def _round_up(x, m):
    return ((x + m - 1) // m) * m


def _chamfer_kernel(xa_ref, ya_ref, o_ref, rowmin_ref, colmin_ref,
                    *, n_valid, m_valid, tn, tm):
    """Grid = (batch-block, N-tile, M-tile); M-tile is the innermost axis."""
    i = pl.program_id(1)              # N-tile index
    j = pl.program_id(2)              # M-tile index
    n_n_tiles = pl.num_programs(1)
    n_m_tiles = pl.num_programs(2)

    @pl.when((i == 0) & (j == 0))
    def _():
        o_ref[...] = jnp.zeros_like(o_ref)

    # Single MXU pass: dist = ||x||^2 + ||y||^2 - 2 x.y  (norms, -2 factor and
    # padding sentinels are already folded into the augmented operands).
    dist = jnp.einsum('bnd,bdm->bnm', xa_ref[...], ya_ref[...],
                      preferred_element_type=jnp.float32)   # (Bt, tn, tm)

    # ---- running row-min (nearest out-point per in-point), online over j ----
    row_tile_min = jnp.maximum(jnp.min(dist, axis=2, keepdims=True), 0.0)

    @pl.when(j == 0)
    def _():
        rowmin_ref[...] = jnp.full_like(rowmin_ref, jnp.inf)

    new_row = jnp.minimum(rowmin_ref[...], row_tile_min)     # (Bt, tn, 1)
    rowmin_ref[...] = new_row

    # ---- running column-min (nearest in-point per out-point), online over i -
    col_tile_min = jnp.maximum(jnp.min(dist, axis=1, keepdims=True), 0.0)
    off = pl.multiple_of(j * tm, 128)

    @pl.when(i == 0)
    def _():
        colmin_ref[:, :, pl.ds(off, tm)] = jnp.full(
            (colmin_ref.shape[0], 1, tm), jnp.inf, dtype=jnp.float32)

    new_col = jnp.minimum(colmin_ref[:, :, pl.ds(off, tm)], col_tile_min)
    colmin_ref[:, :, pl.ds(off, tm)] = new_col               # (Bt, 1, tm)

    # Row-min contributions complete once the last M-tile has been seen.
    @pl.when(j == n_m_tiles - 1)
    def _():
        row_ids = jax.lax.broadcasted_iota(jnp.int32, (1, tn, 1), 1) + i * tn
        mask_row = row_ids < n_valid
        contrib = jnp.sum(jnp.where(mask_row, new_row, 0.0))
        o_ref[...] += contrib.reshape(o_ref.shape)

    # Column-min contributions complete once the last N-tile has been seen.
    @pl.when(i == n_n_tiles - 1)
    def _():
        col_ids = jax.lax.broadcasted_iota(jnp.int32, (1, 1, tm), 2) + j * tm
        mask_col = col_ids < m_valid
        contrib = jnp.sum(jnp.where(mask_col, new_col, 0.0))
        o_ref[...] += contrib.reshape(o_ref.shape)


def chamfer_dist_loss(cloud_in, cloud_out):
    """Batched Chamfer distance. cloud_in: (B, N, D), cloud_out: (B, M, D)."""
    if cloud_in.ndim == 2 and cloud_out.ndim == 2:
        cloud_in = cloud_in[None]
        cloud_out = cloud_out[None]
    B, N, D = cloud_in.shape
    B2, M, D2 = cloud_out.shape
    assert B == B2 and D == D2
    daug = D + 2

    # Tile sizes: lane-dense (multiple of 128) on M, sublane-aligned on N,
    # capped so the single live (Bt, tn, tm) dist slab stays VMEM-safe on v7x.
    tn = min(512, _round_up(N, 8))
    tm = min(1024, _round_up(M, 128))
    n_pad = _round_up(N, tn)
    m_pad = _round_up(M, tm)

    # Batch-block size: amortize per-grid-step overhead for small clouds while
    # (a) keeping bt*tn*tm*4B <= ~4 MiB and (b) keeping at least 2 batch blocks
    # on the "parallel" axis so both v7x TensorCores get work.
    budget_elems = (4 * 1024 * 1024) // 4
    max_bt = max(1, budget_elems // (tn * tm))
    bt = 1
    for d in range(1, min(B, max_bt) + 1):
        if B % d != 0:
            continue
        if B >= 2 and B // d < 2:
            continue
        bt = d

    sentinel = 1e30   # large finite sentinel (no inf -> no 0*inf NaN on MXU)

    x = cloud_in.astype(jnp.float32)
    y = cloud_out.astype(jnp.float32)
    x_sq = jnp.sum(x * x, axis=-1, keepdims=True)            # (B, N, 1)
    y_sq_row = jnp.sum(y * y, axis=-1)[:, None, :]            # (B, 1, M)
    yt = jnp.swapaxes(y, 1, 2)                                # (B, D, M)

    if n_pad != N:
        x = jnp.pad(x, ((0, 0), (0, n_pad - N), (0, 0)))
        x_sq = jnp.pad(x_sq, ((0, 0), (0, n_pad - N), (0, 0)),
                       constant_values=sentinel)
    if m_pad != M:
        yt = jnp.pad(yt, ((0, 0), (0, 0), (0, m_pad - M)))
        y_sq_row = jnp.pad(y_sq_row, ((0, 0), (0, 0), (0, m_pad - M)),
                           constant_values=sentinel)

    ones_n = jnp.ones((B, n_pad, 1), jnp.float32)
    xa = jnp.concatenate([-2.0 * x, x_sq, ones_n], axis=-1)   # (B, n_pad, D+2)
    ones_m = jnp.ones((B, 1, m_pad), jnp.float32)
    ya = jnp.concatenate([yt, ones_m, y_sq_row], axis=1)      # (B, D+2, m_pad)

    n_n_tiles = n_pad // tn
    n_m_tiles = m_pad // tm
    grid = (B // bt, n_n_tiles, n_m_tiles)

    kernel = functools.partial(_chamfer_kernel,
                               n_valid=N, m_valid=M, tn=tn, tm=tm)

    out = pl.pallas_call(
        kernel,
        out_shape=jax.ShapeDtypeStruct((B // bt, 1, 1), jnp.float32),
        grid_spec=pltpu.PrefetchScalarGridSpec(
            num_scalar_prefetch=0,
            grid=grid,
            in_specs=[
                pl.BlockSpec((bt, tn, daug), lambda b, i, j: (b, i, 0)),
                pl.BlockSpec((bt, daug, tm), lambda b, i, j: (b, 0, j)),
            ],
            out_specs=pl.BlockSpec((1, 1, 1), lambda b, i, j: (b, 0, 0)),
            scratch_shapes=[
                pltpu.VMEM((bt, tn, 1), jnp.float32),      # running row-min
                pltpu.VMEM((bt, 1, m_pad), jnp.float32),   # running col-min
            ],
        ),
        compiler_params=pltpu.CompilerParams(
            dimension_semantics=("parallel", "arbitrary", "arbitrary"),
            vmem_limit_bytes=32 * 1024 * 1024,
        ),
        cost_estimate=pl.CostEstimate(
            flops=2 * B * n_pad * m_pad * daug + 4 * B * n_pad * m_pad,
            transcendentals=0,
            bytes_accessed=4 * (B * n_pad * daug * n_m_tiles
                                + B * m_pad * daug * n_n_tiles + B),
        ),
    )(xa, ya)
    return jnp.sum(out)


def _chamfer_ref(cloud_in, cloud_out):
    """Pure-JAX reference (exact squared-difference form) for verification."""
    diff = cloud_in[:, :, None, :] - cloud_out[:, None, :, :]      # (B, N, M, D)
    dist = jnp.sum(diff * diff, axis=-1)                           # (B, N, M)
    return jnp.sum(jnp.min(dist, axis=2)) + jnp.sum(jnp.min(dist, axis=1))


if __name__ == "__main__":
    key = jax.random.PRNGKey(0)
    k1, k2, k3, k4 = jax.random.split(key, 4)

    # Case 1: aligned-ish shapes.
    B, N, M, D = 2, 64, 48, 3
    cin = jax.random.normal(k1, (B, N, D), dtype=jnp.float32)
    cout = jax.random.normal(k2, (B, M, D), dtype=jnp.float32)
    loss = jax.block_until_ready(chamfer_dist_loss(cin, cout))
    ref = jax.block_until_ready(_chamfer_ref(cin, cout))
    assert jnp.allclose(loss, ref, rtol=1e-4, atol=1e-4), (loss, ref)

    # Case 2: ragged shapes exercising the row/column padding sentinels.
    B, N, M, D = 3, 37, 53, 3
    cin = jax.random.normal(k3, (B, N, D), dtype=jnp.float32)
    cout = jax.random.normal(k4, (B, M, D), dtype=jnp.float32)
    loss = jax.block_until_ready(chamfer_dist_loss(cin, cout))
    ref = jax.block_until_ready(_chamfer_ref(cin, cout))
    assert jnp.allclose(loss, ref, rtol=1e-4, atol=1e-4), (loss, ref)

    print("KERNEL_OK")
</pallas_src>

<mosaic_0001>
module attributes {stable_mosaic.version = 11 : i64} {
  func.func @_chamfer_kernel(%arg0: i32, %arg1: i32, %arg2: i32, %arg3: memref<1x64x5xf32, #tpu.memory_space<vmem>>, %arg4: memref<1x5x128xf32, #tpu.memory_space<vmem>>, %arg5: memref<1x1x1xf32, #tpu.memory_space<vmem>>, %arg6: memref<1x64x1xf32, #tpu.memory_space<vmem>>, %arg7: memref<1x1x128xf32, #tpu.memory_space<vmem>>) attributes {dimension_semantics = [#tpu.dimension_semantics<parallel>, #tpu.dimension_semantics<arbitrary>, #tpu.dimension_semantics<arbitrary>], iteration_bounds = array<i64: 2, 1, 1>, scalar_prefetch = 0 : i64, scratch_operands = 2 : i64, tpu.core_type = #tpu.core_type<tc>, window_params = [{transform_indices = @transform_0, window_bounds = array<i64: 1, 64, 5>}, {transform_indices = @transform_1, window_bounds = array<i64: 1, 5, 128>}, {transform_indices = @transform_2, window_bounds = array<i64: 1, 1, 1>}]} {
    %c0_i32 = arith.constant 0 : i32
    %0 = arith.cmpi eq, %arg1, %c0_i32 : i32
    %c0_i32_0 = arith.constant 0 : i32
    %1 = arith.cmpi eq, %arg2, %c0_i32_0 : i32
    %2 = arith.andi %0, %1 : i1
    %3 = arith.extui %2 : i1 to i32
    %c0_i32_1 = arith.constant 0 : i32
    %4 = arith.cmpi ne, %3, %c0_i32_1 : i32
    scf.if %4 {
      %cst_29 = arith.constant 0.000000e+00 : f32
      %38 = vector.broadcast %cst_29 : f32 to vector<1x1x1xf32>
      %c0_30 = arith.constant 0 : index
      %c0_31 = arith.constant 0 : index
      %c0_32 = arith.constant 0 : index
      %39 = vector.load %arg5[%c0_30, %c0_31, %c0_32] : memref<1x1x1xf32, #tpu.memory_space<vmem>>, vector<1x1x1xf32>
      tpu.vector_store %arg5[%c0_30, %c0_31, %c0_32], %38 {strides = array<i32>} : memref<1x1x1xf32, #tpu.memory_space<vmem>>, vector<1x1x1xf32>,
    } else {
    }
    %c0 = arith.constant 0 : index
    %c0_2 = arith.constant 0 : index
    %c0_3 = arith.constant 0 : index
    %5 = vector.load %arg3[%c0, %c0_2, %c0_3] : memref<1x64x5xf32, #tpu.memory_space<vmem>>, vector<1x64x5xf32>
    %c0_4 = arith.constant 0 : index
    %c0_5 = arith.constant 0 : index
    %c0_6 = arith.constant 0 : index
    %6 = vector.load %arg4[%c0_4, %c0_5, %c0_6] : memref<1x5x128xf32, #tpu.memory_space<vmem>>, vector<1x5x128xf32>
    "tpu.trace_start"() <{level = 10 : i32, message = "bnd,bdm->bnm"}> : () -> ()
    %cst = arith.constant dense<0.000000e+00> : vector<1x64x128xf32>
    %7 = tpu.matmul %5, %6, %cst {dimension_numbers = #tpu.dot_dimension_numbers<[2], [1], [1], [2], [0, 0, 0, 1, 1, 2], [0], [0]>} : vector<1x64x5xf32>, vector<1x5x128xf32>, vector<1x64x128xf32> -> vector<1x64x128xf32>
    "tpu.trace_stop"() : () -> ()
    %cst_7 = arith.constant dense<0x7F800000> : vector<1x64xf32>
    %8 = vector.multi_reduction <minimumf>, %7, %cst_7 [2] : vector<1x64x128xf32> to vector<1x64xf32>
    %9 = vector.shape_cast %8 : vector<1x64xf32> to vector<1x64x1xf32>
    %cst_8 = arith.constant 0.000000e+00 : f32
    %10 = vector.broadcast %cst_8 : f32 to vector<1x64x1xf32>
    %11 = arith.maximumf %9, %10 : vector<1x64x1xf32>
    %c0_i32_9 = arith.constant 0 : i32
    %12 = arith.cmpi eq, %arg2, %c0_i32_9 : i32
    %13 = arith.extui %12 : i1 to i32
    %c0_i32_10 = arith.constant 0 : i32
    %14 = arith.cmpi ne, %13, %c0_i32_10 : i32
    scf.if %14 {
      %cst_29 = arith.constant 0x7F800000 : f32
      %38 = vector.broadcast %cst_29 : f32 to vector<1x64x1xf32>
      %c0_30 = arith.constant 0 : index
      %c0_31 = arith.constant 0 : index
      %c0_32 = arith.constant 0 : index
      %39 = vector.load %arg6[%c0_30, %c0_31, %c0_32] : memref<1x64x1xf32, #tpu.memory_space<vmem>>, vector<1x64x1xf32>
      tpu.vector_store %arg6[%c0_30, %c0_31, %c0_32], %38 {strides = array<i32>} : memref<1x64x1xf32, #tpu.memory_space<vmem>>, vector<1x64x1xf32>,
    } else {
    }
    %c0_11 = arith.constant 0 : index
    %c0_12 = arith.constant 0 : index
    %c0_13 = arith.constant 0 : index
    %15 = vector.load %arg6[%c0_11, %c0_12, %c0_13] : memref<1x64x1xf32, #tpu.memory_space<vmem>>, vector<1x64x1xf32>
    %16 = arith.minimumf %15, %11 : vector<1x64x1xf32>
    %c0_14 = arith.constant 0 : index
    %c0_15 = arith.constant 0 : index
    %c0_16 = arith.constant 0 : index
    %17 = vector.load %arg6[%c0_14, %c0_15, %c0_16] : memref<1x64x1xf32, #tpu.memory_space<vmem>>, vector<1x64x1xf32>
    tpu.vector_store %arg6[%c0_14, %c0_15, %c0_16], %16 {strides = array<i32>} : memref<1x64x1xf32, #tpu.memory_space<vmem>>, vector<1x64x1xf32>,
    %cst_17 = arith.constant dense<0x7F800000> : vector<1x128xf32>
    %18 = vector.multi_reduction <minimumf>, %7, %cst_17 [1] : vector<1x64x128xf32> to vector<1x128xf32>
    %19 = vector.shape_cast %18 : vector<1x128xf32> to vector<1x1x128xf32>
    %cst_18 = arith.constant 0.000000e+00 : f32
    %20 = vector.broadcast %cst_18 : f32 to vector<1x1x128xf32>
    %21 = arith.maximumf %19, %20 : vector<1x1x128xf32>
    %c128_i32 = arith.constant 128 : i32
    %22 = arith.muli %arg2, %c128_i32 : i32
    %23 = tpu.assume_multiple %22, 128 : i32
    %c0_i32_19 = arith.constant 0 : i32
    %24 = arith.cmpi eq, %arg1, %c0_i32_19 : i32
    %25 = arith.extui %24 : i1 to i32
    %c0_i32_20 = arith.constant 0 : i32
    %26 = arith.cmpi ne, %25, %c0_i32_20 : i32
    scf.if %26 {
      %cst_29 = arith.constant 0x7F800000 : f32
      %38 = vector.broadcast %cst_29 : f32 to vector<1x1x128xf32>
      %c0_30 = arith.constant 0 : index
      %c0_31 = arith.constant 0 : index
      %39 = arith.index_cast %23 : i32 to index
      %40 = vector.load %arg7[%c0_30, %c0_31, %39] : memref<1x1x128xf32, #tpu.memory_space<vmem>>, vector<1x1x128xf32>
      tpu.vector_store %arg7[%c0_30, %c0_31, %39], %38 {strides = array<i32>} : memref<1x1x128xf32, #tpu.memory_space<vmem>>, vector<1x1x128xf32>,
    } else {
    }
    %c0_21 = arith.constant 0 : index
    %c0_22 = arith.constant 0 : index
    %27 = arith.index_cast %23 : i32 to index
    %28 = vector.load %arg7[%c0_21, %c0_22, %27] : memref<1x1x128xf32, #tpu.memory_space<vmem>>, vector<1x1x128xf32>
    %29 = arith.minimumf %28, %21 : vector<1x1x128xf32>
    %c0_23 = arith.constant 0 : index
    %c0_24 = arith.constant 0 : index
    %30 = arith.index_cast %23 : i32 to index
    %31 = vector.load %arg7[%c0_23, %c0_24, %30] : memref<1x1x128xf32, #tpu.memory_space<vmem>>, vector<1x1x128xf32>
    tpu.vector_store %arg7[%c0_23, %c0_24, %30], %29 {strides = array<i32>} : memref<1x1x128xf32, #tpu.memory_space<vmem>>, vector<1x1x128xf32>,
    %c0_i32_25 = arith.constant 0 : i32
    %32 = arith.cmpi eq, %arg2, %c0_i32_25 : i32
    %33 = arith.extui %32 : i1 to i32
    %c0_i32_26 = arith.constant 0 : i32
    %34 = arith.cmpi ne, %33, %c0_i32_26 : i32
    scf.if %34 {
      %38 = tpu.iota {dimensions = array<i32: 1>} : vector<1x64x1xi32>
      %c64_i32 = arith.constant 64 : i32
      %39 = arith.muli %arg1, %c64_i32 : i32
      %40 = vector.broadcast %39 : i32 to vector<1x64x1xi32>
      %41 = arith.addi %38, %40 : vector<1x64x1xi32>
      %c64_i32_29 = arith.constant 64 : i32
      %42 = vector.broadcast %c64_i32_29 : i32 to vector<1x64x1xi32>
      %43 = arith.cmpi slt, %41, %42 : vector<1x64x1xi32>
      %cst_30 = arith.constant 0.000000e+00 : f32
      %44 = vector.broadcast %cst_30 : f32 to vector<1x64x1xf32>
      %45 = arith.select %43, %16, %44 : vector<1x64x1xi1>, vector<1x64x1xf32>
      %46 = vector.shape_cast %45 : vector<1x64x1xf32> to vector<1x1x64x1xf32>
      %cst_31 = arith.constant dense<0.000000e+00> : vector<1xf32>
      %47 = vector.multi_reduction <add>, %46, %cst_31 [1, 2, 3] : vector<1x1x64x1xf32> to vector<1xf32>
      %48 = vector.shape_cast %47 : vector<1xf32> to vector<1x1x1x1xf32>
      %49 = vector.extract %48[0, 0, 0, 0] : f32 from vector<1x1x1x1xf32>
      %c0_32 = arith.constant 0 : index
      %c0_33 = arith.constant 0 : index
      %c0_34 = arith.constant 0 : index
      %50 = vector.load %arg5[%c0_32, %c0_33, %c0_34] : memref<1x1x1xf32, #tpu.memory_space<vmem>>, vector<1x1x1xf32>
      %51 = vector.broadcast %49 : f32 to vector<1x1x1xf32>
      %52 = arith.addf %50, %51 : vector<1x1x1xf32>
      %c0_35 = arith.constant 0 : index
      %c0_36 = arith.constant 0 : index
      %c0_37 = arith.constant 0 : index
      %53 = vector.load %arg5[%c0_35, %c0_36, %c0_37] : memref<1x1x1xf32, #tpu.memory_space<vmem>>, vector<1x1x1xf32>
      tpu.vector_store %arg5[%c0_35, %c0_36, %c0_37], %52 {strides = array<i32>} : memref<1x1x1xf32, #tpu.memory_space<vmem>>, vector<1x1x1xf32>,
    } else {
    }
    %c0_i32_27 = arith.constant 0 : i32
    %35 = arith.cmpi eq, %arg1, %c0_i32_27 : i32
    %36 = arith.extui %35 : i1 to i32
    %c0_i32_28 = arith.constant 0 : i32
    %37 = arith.cmpi ne, %36, %c0_i32_28 : i32
    scf.if %37 {
      %38 = tpu.iota {dimensions = array<i32: 2>} : vector<1x1x128xi32>
      %c128_i32_29 = arith.constant 128 : i32
      %39 = arith.muli %arg2, %c128_i32_29 : i32
      %40 = vector.broadcast %39 : i32 to vector<1x1x128xi32>
      %41 = arith.addi %38, %40 : vector<1x1x128xi32>
      %c48_i32 = arith.constant 48 : i32
      %42 = vector.broadcast %c48_i32 : i32 to vector<1x1x128xi32>
      %43 = arith.cmpi slt, %41, %42 : vector<1x1x128xi32>
      %cst_30 = arith.constant 0.000000e+00 : f32
      %44 = vector.broadcast %cst_30 : f32 to vector<1x1x128xf32>
      %45 = arith.select %43, %29, %44 : vector<1x1x128xi1>, vector<1x1x128xf32>
      %46 = vector.shape_cast %45 : vector<1x1x128xf32> to vector<1x1x1x128xf32>
      %cst_31 = arith.constant dense<0.000000e+00> : vector<1xf32>
      %47 = vector.multi_reduction <add>, %46, %cst_31 [1, 2, 3] : vector<1x1x1x128xf32> to vector<1xf32>
      %48 = vector.shape_cast %47 : vector<1xf32> to vector<1x1x1x1xf32>
      %49 = vector.extract %48[0, 0, 0, 0] : f32 from vector<1x1x1x1xf32>
      %c0_32 = arith.constant 0 : index
      %c0_33 = arith.constant 0 : index
      %c0_34 = arith.constant 0 : index
      %50 = vector.load %arg5[%c0_32, %c0_33, %c0_34] : memref<1x1x1xf32, #tpu.memory_space<vmem>>, vector<1x1x1xf32>
      %51 = vector.broadcast %49 : f32 to vector<1x1x1xf32>
      %52 = arith.addf %50, %51 : vector<1x1x1xf32>
      %c0_35 = arith.constant 0 : index
      %c0_36 = arith.constant 0 : index
      %c0_37 = arith.constant 0 : index
      %53 = vector.load %arg5[%c0_35, %c0_36, %c0_37] : memref<1x1x1xf32, #tpu.memory_space<vmem>>, vector<1x1x1xf32>
      tpu.vector_store %arg5[%c0_35, %c0_36, %c0_37], %52 {strides = array<i32>} : memref<1x1x1xf32, #tpu.memory_space<vmem>>, vector<1x1x1xf32>,
    } else {
    }
    return
  }
  func.func @transform_0(%arg0: i32, %arg1: i32, %arg2: i32) -> (i32, i32, i32) {
    %c0_i32 = arith.constant 0 : i32
    %c0_i32_0 = arith.constant 0 : i32
    return %arg0, %arg1, %c0_i32 : i32, i32, i32
  }
  func.func @transform_1(%arg0: i32, %arg1: i32, %arg2: i32) -> (i32, i32, i32) {
    %c0_i32 = arith.constant 0 : i32
    %c0_i32_0 = arith.constant 0 : i32
    return %arg0, %c0_i32, %arg2 : i32, i32, i32
  }
  func.func @transform_2(%arg0: i32, %arg1: i32, %arg2: i32) -> (i32, i32, i32) {
    %c0_i32 = arith.constant 0 : i32
    %c0_i32_0 = arith.constant 0 : i32
    %c0_i32_1 = arith.constant 0 : i32
    return %arg0, %c0_i32, %c0_i32_0 : i32, i32, i32
  }
}

</mosaic_0001>

<llo_original>
// kernel: tpu_custom_call.1
$region0: #{tpu_custom_call.1}
  #allocation0 [shape = 'u32[]', space=smem, size = 0x4, offset = 0x4, fixed_abs, tag = 'smem constant byte address 0x4 - core index']
  #allocation1 [shape = 'u32[144,128]{1,0:T(1,128)}', space=vmem, size = 0x12000, scoped, tag = 'internal scratch']
  #allocation2 [shape = 'f32[1,64,1]{2,1,0:T(8,128)}', space=vmem, size = 0x8000, scoped, tag = 'scratch operand']
  #allocation3 [shape = 'f32[1,1,128]{2,1,0:T(1,128)}', space=vmem, size = 0x200, scoped, tag = 'scratch operand']
  %s0 = inlined_call_operand.vmem [shape: f32[2,64,5], index: 0, kind: input, shape index: {}]
  %s1 = inlined_call_operand.vmem [shape: f32[2,5,128], index: 1, kind: input, shape index: {}]
  %s2 = inlined_call_operand.vmem [shape: f32[2,1,1], index: 2, kind: output, shape index: {}]
  %s3 = sld [smem:[#allocation0]]
  $region61: #{tpu_custom_call.1} parent=0
    _
  %s5 = ssub.s32 1, %s3
  %s6 = scalar_select 0, %s5, %s3
  loop: start=0, step=1, limit=4
  $region2: #{tpu_custom_call.1} parent=0 // loop_pre_header
    _
  $region3: #{tpu_custom_call.1} parent=0 // loop_header
    %s8 = sphi 0, %s12
    %p9 = scmp.ge.s32.totalorder %s8, 4
    %s15 = sphi 0, %s34
    %s16 = sphi 0, %s30
    %s17 = sphi 0, %s26
    %s18 = sphi 0, %s15
    %s19 = sphi 0, %s16
    %s20 = sphi 0, %s17
    %s21 = sphi 0, %s18
    %s22 = sphi 0, %s19
    %s23 = sphi 0, %s20
    %s39 = sphi 0, %s41
    %s42 = sphi 0, %s39
    %s43 = sphi 0, %s42
    %s59 = sphi 0, %s43
    %s67 = sphi 0, %s69
    %s70 = sphi 0, %s67
    %s71 = sphi 0, %s70
    %s87 = sphi 0, %s71
    %s93 = sphi 0, %s95
    %s96 = sphi 0, %s93
    %s97 = sphi 0, %s96
    %s113 = sphi 0, %s97
  $region4: #{tpu_custom_call.1} parent=0 // loop_header_branch
    %11 = sbr.rel (%p9) target = $region8
  $region5: #{tpu_custom_call.1} parent=0 // loop_body
    %s13 = ssub.s32 %s8, 1
    %s14 = ssub.s32 %s8, 2
    %s24 = sadd.s32 1, %s17
    %p25 = scmp.ge.s32.totalorder %s24, 1
    %s26 = scalar_select %p25, 0, %s24
    %s27 = sadd.s32 1, %s16
    %s28 = scalar_select %p25, %s27, %s16
    %p29 = scmp.ge.s32.totalorder %s28, 1
    %s30 = scalar_select %p29, 0, %s28
    %s31 = sadd.s32 1, %s15
    %s32 = scalar_select %p29, %s31, %s15
    %p33 = scmp.ge.s32.totalorder %s32, 2
    %s34 = scalar_select %p33, 0, %s32
    %s35 = ssub.s32 %s15, %s34
    %s36 = ssub.s32 %s16, %s30
    %s37 = sor.u32 %s35, %s36
    %p38 = scmp.eq.s32.totalorder %s37, 0
    %s40 = sadd.s32 %s39, 1
    %s41 = scalar_select %p38, %s39, %s40
    %p44 = pneg %p38
    %p45 = scmp.eq.s32.totalorder %s8, 1
    %p46 = por %p44, %p45
    %p47 = scmp.ne.s32.totalorder %s39, %s42
    %p48 = scmp.eq.s32.totalorder %s8, 0
    %p49 = por %p47, %p48
    %p50 = scmp.ne.s32.totalorder %s39, %s42
    %p51 = scmp.eq.s32.totalorder %s13, 1
    %p52 = por %p50, %p51
    %p53 = scmp.ne.s32.totalorder %s42, %s43
    %p54 = scmp.eq.s32.totalorder %s13, 0
    %p55 = por %p53, %p54
    %p56 = scmp.ne.s32.totalorder %s42, %s43
    %p57 = scmp.eq.s32.totalorder %s14, 1
    %p58 = por %p56, %p57
    %p60 = scmp.ne.s32.totalorder %s43, %s59
    %p61 = scmp.eq.s32.totalorder %s14, 0
    %p62 = por %p60, %p61
    %s63 = ssub.s32 %s15, %s34
    %s64 = ssub.s32 %s17, %s26
    %s65 = sor.u32 %s63, %s64
    %p66 = scmp.eq.s32.totalorder %s65, 0
    %s68 = sadd.s32 %s67, 1
    %s69 = scalar_select %p66, %s67, %s68
    %p72 = pneg %p66
    %p73 = scmp.eq.s32.totalorder %s8, 1
    %p74 = por %p72, %p73
    %p75 = scmp.ne.s32.totalorder %s67, %s70
    %p76 = scmp.eq.s32.totalorder %s8, 0
    %p77 = por %p75, %p76
    %p78 = scmp.ne.s32.totalorder %s67, %s70
    %p79 = scmp.eq.s32.totalorder %s13, 1
    %p80 = por %p78, %p79
    %p81 = scmp.ne.s32.totalorder %s70, %s71
    %p82 = scmp.eq.s32.totalorder %s13, 0
    %p83 = por %p81, %p82
    %p84 = scmp.ne.s32.totalorder %s70, %s71
    %p85 = scmp.eq.s32.totalorder %s14, 1
    %p86 = por %p84, %p85
    %p88 = scmp.ne.s32.totalorder %s71, %s87
    %p89 = scmp.eq.s32.totalorder %s14, 0
    %p90 = por %p88, %p89
    %s91 = ssub.s32 %s15, %s34
    %p92 = scmp.eq.s32.totalorder %s91, 0
    %s94 = sadd.s32 %s93, 1
    %s95 = scalar_select %p92, %s93, %s94
    %p98 = pneg %p92
    %p99 = scmp.eq.s32.totalorder %s8, 1
    %p100 = por %p98, %p99
    %p101 = scmp.ne.s32.totalorder %s93, %s96
    %p102 = scmp.eq.s32.totalorder %s8, 0
    %p103 = por %p101, %p102
    %p104 = scmp.ne.s32.totalorder %s93, %s96
    %p105 = scmp.eq.s32.totalorder %s13, 1
    %p106 = por %p104, %p105
    %p107 = scmp.ne.s32.totalorder %s96, %s97
    %p108 = scmp.eq.s32.totalorder %s13, 0
    %p109 = por %p107, %p108
    %p110 = scmp.ne.s32.totalorder %s96, %s97
    %p111 = scmp.eq.s32.totalorder %s14, 1
    %p112 = por %p110, %p111
    %p114 = scmp.ne.s32.totalorder %s97, %s113
    %p115 = scmp.eq.s32.totalorder %s14, 0
    %p116 = por %p114, %p115
    %p117 = scmp.le.s32.totalorder 1, %s8
    %p118 = scmp.lt.s32.totalorder %s8, 3
    %p119 = pnand %p117, %p118
    %p120 = pneg %p119
    // Predicated region
    $region9: #{tpu_custom_call.1} parent=5 // pred_check
      _
    $region10: #{tpu_custom_call.1} parent=5 // pred_check_branch
      %122 = sbr.rel (%p119) target = $region12
    $region11: #{tpu_custom_call.1} parent=5 // pred_region
      %s123 = ssub.s32 %s8, 1
    $region12: #{tpu_custom_call.1} parent=5 // pred_fallthru
      _
    %p124 = scmp.lt.s32.totalorder %s8, 2
    // Predicated region
    $region13: #{tpu_custom_call.1} parent=5 // pred_check
      %p125 = pneg %p124
    $region14: #{tpu_custom_call.1} parent=5 // pred_check_branch
      %127 = sbr.rel (%p125) target = $region16
    $region15: #{tpu_custom_call.1} parent=5 // pred_region
      // Predicated region
      $region17: #{tpu_custom_call.1} parent=15 // pred_check
        %p128 = pneg %p49
      $region18: #{tpu_custom_call.1} parent=15 // pred_check_branch
        %130 = sbr.rel (%p128) target = $region20
      $region19: #{tpu_custom_call.1} parent=15 // pred_region
        %s131 = smul.u32 8, %s16
        %p132 = scmp.lt.s32.totalorder %s15, 1
        %s133 = scalar_select %p132, %s15, 1
        %p134 = scmp.lt.s32.totalorder %s131, 7
        %s135 = scalar_select %p134, %s131, 7
        %s136 = smul.addr %s133, 8
        %s137 = sadd.s32 %s135, %s136
        %s138 = smul.addr %s137, 8
        %s139 = scalar_lea.vmem %s0, %s138
        %s140 = smul.u32 8, %s16
      $region20: #{tpu_custom_call.1} parent=15 // pred_fallthru
        _
      // Predicated region
      $region21: #{tpu_custom_call.1} parent=15 // pred_check
        %p141 = pneg %p77
      $region22: #{tpu_custom_call.1} parent=15 // pred_check_branch
        %143 = sbr.rel (%p141) target = $region24
      $region23: #{tpu_custom_call.1} parent=15 // pred_region
        %p144 = scmp.lt.s32.totalorder %s15, 1
        %s145 = scalar_select %p144, %s15, 1
        %p146 = scmp.lt.s32.totalorder %s17, 0
        %s147 = scalar_select %p146, %s17, 0
        %s148 = sadd.s32 %s147, %s145
        %s149 = smul.addr %s148, 8
        %s150 = scalar_lea.vmem %s1, %s149
      $region24: #{tpu_custom_call.1} parent=15 // pred_fallthru
        _
    $region16: #{tpu_custom_call.1} parent=5 // pred_fallthru
      _
    %p151 = scmp.le.s32.totalorder 1, %s8
    %p152 = scmp.lt.s32.totalorder %s8, 3
    %p153 = pnand %p151, %p152
    %p154 = pneg %p153
    // Predicated region
    $region25: #{tpu_custom_call.1} parent=5 // pred_check
      _
    $region26: #{tpu_custom_call.1} parent=5 // pred_check_branch
      %156 = sbr.rel (%p153) target = $region28
    $region27: #{tpu_custom_call.1} parent=5 // pred_region
      %s157 = ssub.s32 %s8, 1
      %s158 = smul.u32 8, %s19
      %p159 = scmp.lt.s32.totalorder %s18, 1
      %s160 = scalar_select %p159, %s18, 1
      %p161 = scmp.lt.s32.totalorder %s158, 7
      %s162 = scalar_select %p161, %s158, 7
      %s163 = smul.addr %s160, 8
      %s164 = sadd.s32 %s162, %s163
      %s165 = smul.addr %s164, 8
      %s166 = scalar_lea.vmem %s0, %s165
      %p167 = pneg %p55
      %p168 = pneg %p52
      %p169 = scmp.lt.s32.totalorder %s18, 1
      %s170 = scalar_select %p169, %s18, 1
      %p171 = scmp.lt.s32.totalorder %s20, 0
      %s172 = scalar_select %p171, %s20, 0
      %s173 = sadd.s32 %s172, %s170
      %s174 = smul.addr %s173, 8
      %s175 = scalar_lea.vmem %s1, %s174
      %p176 = pneg %p83
      %p177 = pneg %p80
      %p178 = pneg %p109
      %p179 = pneg %p106
      %p180 = scmp.lt.s32.totalorder %s18, 1
      %s181 = scalar_select %p180, %s18, 1
      %s182 = scalar_lea.vmem %s2, %s181
      %s183 = smul.u32 8, %s19
      %p184 = scmp.lt.s32.totalorder %s18, 1
      %s185 = scalar_select %p184, %s18, 1
      %p186 = scmp.lt.s32.totalorder %s183, 7
      %s187 = scalar_select %p186, %s183, 7
      %s188 = smul.addr %s185, 8
      %s189 = sadd.s32 %s187, %s188
      %s190 = smul.addr %s189, 8
      %s191 = scalar_lea.vmem %s0, %s190
      %s192 = smul.u32 8, %s19
      %p193 = scmp.lt.s32.totalorder %s18, 1
      %s194 = scalar_select %p193, %s18, 1
      %p195 = scmp.lt.s32.totalorder %s20, 0
      %s196 = scalar_select %p195, %s20, 0
      %s197 = sadd.s32 %s196, %s194
      %s198 = smul.addr %s197, 8
      %s199 = scalar_lea.vmem %s1, %s198
      %p200 = scmp.lt.s32.totalorder %s18, 1
      %s201 = scalar_select %p200, %s18, 1
      %s202 = scalar_lea.vmem %s2, %s201
      %p203 = scmp.eq.s32.totalorder %s19, 0
      %p204 = scmp.eq.s32.totalorder %s20, 0
      %p205 = pnand %p203, %p204
      %p206 = pneg %p205
      // Predicated region
      $region29: #{tpu_custom_call.1} parent=27 // pred_check
        _
      $region30: #{tpu_custom_call.1} parent=27 // pred_check_branch
        %208 = sbr.rel (%p205) target = $region32
      $region31: #{tpu_custom_call.1} parent=27 // pred_region
        %vm209 = vcmask 0
        %210 = vst.msk [vmem:[%s202] sm:$0x1] %vm209, 0.0
      $region32: #{tpu_custom_call.1} parent=27 // pred_fallthru
        _
      %v211 = vld [vmem:[%s191] sm:$0xff]
      %v212 = vld [vmem:[%s191 + $0x8] sm:$0xff]
      %v213 = vld [vmem:[%s191 + $0x10] sm:$0xff]
      %v214 = vld [vmem:[%s191 + $0x18] sm:$0xff]
      %v215 = vld [vmem:[%s191 + $0x20] sm:$0xff]
      %v216 = vld [vmem:[%s191 + $0x28] sm:$0xff]
      %v217 = vld [vmem:[%s191 + $0x30] sm:$0xff]
      %v218 = vld [vmem:[%s191 + $0x38] sm:$0xff]
      %v219 = vld [vmem:[%s199] sm:$0x1f]
      %vm220 = vcmask 39936
      %v222 = vsel %vm220, %v211, 0
      %v225 = vsel %vm220, %v212, 0
      %v228 = vsel %vm220, %v213, 0
      %v231 = vsel %vm220, %v214, 0
      %v234 = vsel %vm220, %v215, 0
      %v237 = vsel %vm220, %v216, 0
      %v240 = vsel %vm220, %v217, 0
      %v243 = vsel %vm220, %v218, 0
      %vm245 = vcmask 1044480
      %v247 = vsel %vm245, %v219, 0
      %249 = vmatprep.subr.mxu0 0.0
      %250 = vmatpush1.msra.mxu0 %v247
      %251 = vmatprep.subr.mxu0 0.0
      %252 = vmatpush1.msra.mxu0 0.0
      %253 = vmatprep.subr.mxu0 0.0
      %254 = vmatpush1.msra.mxu0 0.0
      %255 = vmatprep.subr.mxu0 0.0
      %256 = vmatpush1.msra.mxu0 0.0
      %257 = vmatprep.subr.mxu0 0.0
      %258 = vmatpush1.msra.mxu0 0.0
      %259 = vmatprep.subr.mxu0 0.0
      %260 = vmatpush1.msra.mxu0 0.0
      %261 = vmatprep.subr.mxu0 0.0
      %262 = vmatpush1.msra.mxu0 0.0
      %263 = vmatprep.subr.mxu0 0.0
      %264 = vmatpush1.msra.mxu0 0.0
      %265 = vmatprep.subr.mxu0 0.0
      %266 = vmatpush1.msra.mxu0 0.0
      %267 = vmatprep.subr.mxu0 0.0
      %268 = vmatpush1.msra.mxu0 0.0
      %269 = vmatprep.subr.mxu0 0.0
      %270 = vmatpush1.msra.mxu0 0.0
      %271 = vmatprep.subr.mxu0 0.0
      %272 = vmatpush1.msra.mxu0 0.0
      %273 = vmatprep.subr.mxu0 0.0
      %274 = vmatpush1.msra.mxu0 0.0
      %275 = vmatprep.subr.mxu0 0.0
      %276 = vmatpush1.msra.mxu0 0.0
      %277 = vmatprep.subr.mxu0 0.0
      %278 = vmatpush1.msra.mxu0 0.0
      %279 = vmatprep.subr.mxu0 0.0
      %280 = vmatpush1.msra.mxu0 0.0
      %281 = vmatprep.subr.mxu0 0.0
      %282 = vmatpush1.msra.mxu0 0.0
      %283 = vmatprep.subr.mxu0 0.0
      %284 = vmatpush1.msra.mxu0 0.0
      %285 = vmatprep.subr.mxu0 0.0
      %286 = vmatpush1.msra.mxu0 0.0
      %287 = vmatprep.subr.mxu0 0.0
      %288 = vmatpush1.msra.mxu0 0.0
      %289 = vmatprep.subr.mxu0 0.0
      %290 = vmatpush1.msra.mxu0 0.0
      %291 = vmatprep.subr.mxu0 0.0
      %292 = vmatpush1.msra.mxu0 0.0
      %293 = vmatprep.subr.mxu0 0.0
      %294 = vmatpush1.msra.mxu0 0.0
      %295 = vmatprep.subr.mxu0 0.0
      %296 = vmatpush1.msra.mxu0 0.0
      %297 = vmatprep.subr.mxu0 0.0
      %298 = vmatpush1.msra.mxu0 0.0
      %299 = vmatprep.subr.mxu0 0.0
      %300 = vmatpush1.msra.mxu0 0.0
      %301 = vmatprep.subr.mxu0 0.0
      %302 = vmatpush1.msra.mxu0 0.0
      %303 = vmatprep.subr.mxu0 0.0
      %304 = vmatpush1.msra.mxu0 0.0
      %305 = vmatprep.subr.mxu0 0.0
      %306 = vmatpush1.msra.mxu0 0.0
      %307 = vmatprep.subr.mxu0 0.0
      %308 = vmatpush1.msra.mxu0 0.0
      %309 = vmatprep.subr.mxu0 0.0
      %310 = vmatpush1.msra.mxu0 0.0
      %311 = vmatprep.subr.mxu0 0.0
      %312 = vmatpush1.msra.mxu0 0.0
      %313 = vmatprep.mubr.f32.mxu0 0.0
      %314 = vmatmul.mubr.f32.gmra.mrb[0].mxu0 %v222
      %v315 = vpop.f32.mrb[0].mxu0
      %v316 = vadd.f32 0.0, %v315
      %v317 = vpop.f32.mrb[0].mxu0
      %318 = vmatprep.mubr.f32.mxu0 0.0
      %319 = vmatmul.mubr.f32.gmra.mrb[0].mxu0 %v225
      %v320 = vpop.f32.mrb[0].mxu0
      %v321 = vadd.f32 0.0, %v320
      %v322 = vpop.f32.mrb[0].mxu0
      %323 = vmatprep.mubr.f32.mxu0 0.0
      %324 = vmatmul.mubr.f32.gmra.mrb[0].mxu0 %v228
      %v325 = vpop.f32.mrb[0].mxu0
      %v326 = vadd.f32 0.0, %v325
      %v327 = vpop.f32.mrb[0].mxu0
      %328 = vmatprep.mubr.f32.mxu0 0.0
      %329 = vmatmul.mubr.f32.gmra.mrb[0].mxu0 %v231
      %v330 = vpop.f32.mrb[0].mxu0
      %v331 = vadd.f32 0.0, %v330
      %v332 = vpop.f32.mrb[0].mxu0
      %333 = vmatprep.mubr.f32.mxu0 0.0
      %334 = vmatmul.mubr.f32.gmra.mrb[0].mxu0 %v234
      %v335 = vpop.f32.mrb[0].mxu0
      %v336 = vadd.f32 0.0, %v335
      %v337 = vpop.f32.mrb[0].mxu0
      %338 = vmatprep.mubr.f32.mxu0 0.0
      %339 = vmatmul.mubr.f32.gmra.mrb[0].mxu0 %v237
      %v340 = vpop.f32.mrb[0].mxu0
      %v341 = vadd.f32 0.0, %v340
      %v342 = vpop.f32.mrb[0].mxu0
      %343 = vmatprep.mubr.f32.mxu0 0.0
      %344 = vmatmul.mubr.f32.gmra.mrb[0].mxu0 %v240
      %v345 = vpop.f32.mrb[0].mxu0
      %v346 = vadd.f32 0.0, %v345
      %v347 = vpop.f32.mrb[0].mxu0
      %348 = vmatprep.mubr.f32.mxu0 0.0
      %349 = vmatmul.mubr.f32.gmra.mrb[0].mxu0 %v243
      %v350 = vpop.f32.mrb[0].mxu0
      %v351 = vadd.f32 0.0, %v350
      %v352 = vpop.f32.mrb[0].mxu0
      %353 = vdwg.mxu0
      %354 = vmin.xlane.f32.xlu0 %v316
      %v355 = vpop.xlane.xlu0 %354
      %356 = vmin.xlane.f32.xlu0 %v321
      %v357 = vpop.xlane.xlu0 %356
      %358 = vmin.xlane.f32.xlu0 %v326
      %v359 = vpop.xlane.xlu0 %358
      %360 = vmin.xlane.f32.xlu0 %v331
      %v361 = vpop.xlane.xlu0 %360
      %362 = vmin.xlane.f32.xlu0 %v336
      %v363 = vpop.xlane.xlu0 %362
      %364 = vmin.xlane.f32.xlu0 %v341
      %v365 = vpop.xlane.xlu0 %364
      %366 = vmin.xlane.f32.xlu0 %v346
      %v367 = vpop.xlane.xlu0 %366
      %368 = vmin.xlane.f32.xlu0 %v351
      %v369 = vpop.xlane.xlu0 %368
      %v370 = vmax.f32 %v355, 0.0
      %v371 = vmax.f32 %v357, 0.0
      %v372 = vmax.f32 %v359, 0.0
      %v373 = vmax.f32 %v361, 0.0
      %v374 = vmax.f32 %v363, 0.0
      %v375 = vmax.f32 %v365, 0.0
      %v376 = vmax.f32 %v367, 0.0
      %v377 = vmax.f32 %v369, 0.0
      // Predicated region
      $region33: #{tpu_custom_call.1} parent=27 // pred_check
        %p378 = pneg %p204
      $region34: #{tpu_custom_call.1} parent=27 // pred_check_branch
        %380 = sbr.rel (%p378) target = $region36
      $region35: #{tpu_custom_call.1} parent=27 // pred_region
        %vm381 = vcmask 7168
        %382 = vst.msk [vmem:[#allocation2] sm:$0xff] %vm381, inf
        %383 = vst.msk [vmem:[#allocation2 + $0x8] sm:$0xff] %vm381, inf
        %384 = vst.msk [vmem:[#allocation2 + $0x10] sm:$0xff] %vm381, inf
        %385 = vst.msk [vmem:[#allocation2 + $0x18] sm:$0xff] %vm381, inf
        %386 = vst.msk [vmem:[#allocation2 + $0x20] sm:$0xff] %vm381, inf
        %387 = vst.msk [vmem:[#allocation2 + $0x28] sm:$0xff] %vm381, inf
        %388 = vst.msk [vmem:[#allocation2 + $0x30] sm:$0xff] %vm381, inf
        %389 = vst.msk [vmem:[#allocation2 + $0x38] sm:$0xff] %vm381, inf
      $region36: #{tpu_custom_call.1} parent=27 // pred_fallthru
        _
      %v390 = vld [vmem:[#allocation2] sm:$0xff]
      %v391 = vld [vmem:[#allocation2 + $0x8] sm:$0xff]
      %v392 = vld [vmem:[#allocation2 + $0x10] sm:$0xff]
      %v393 = vld [vmem:[#allocation2 + $0x18] sm:$0xff]
      %v394 = vld [vmem:[#allocation2 + $0x20] sm:$0xff]
      %v395 = vld [vmem:[#allocation2 + $0x28] sm:$0xff]
      %v396 = vld [vmem:[#allocation2 + $0x30] sm:$0xff]
      %v397 = vld [vmem:[#allocation2 + $0x38] sm:$0xff]
      %v398 = vmin.f32 %v390, %v370
      %v399 = vmin.f32 %v391, %v371
      %v400 = vmin.f32 %v392, %v372
      %v401 = vmin.f32 %v393, %v373
      %v402 = vmin.f32 %v394, %v374
      %v403 = vmin.f32 %v395, %v375
      %v404 = vmin.f32 %v396, %v376
      %v405 = vmin.f32 %v397, %v377
      %vm406 = vcmask 7168
      %407 = vst.msk [vmem:[#allocation2] sm:$0xff] %vm406, %v398
      %408 = vst.msk [vmem:[#allocation2 + $0x8] sm:$0xff] %vm406, %v399
      %409 = vst.msk [vmem:[#allocation2 + $0x10] sm:$0xff] %vm406, %v400
      %410 = vst.msk [vmem:[#allocation2 + $0x18] sm:$0xff] %vm406, %v401
      %411 = vst.msk [vmem:[#allocation2 + $0x20] sm:$0xff] %vm406, %v402
      %412 = vst.msk [vmem:[#allocation2 + $0x28] sm:$0xff] %vm406, %v403
      %413 = vst.msk [vmem:[#allocation2 + $0x30] sm:$0xff] %vm406, %v404
      %414 = vst.msk [vmem:[#allocation2 + $0x38] sm:$0xff] %vm406, %v405
      %v415 = vmin.f32 %v316, %v336
      %v416 = vmin.f32 %v321, %v341
      %v417 = vmin.f32 %v326, %v346
      %v418 = vmin.f32 %v331, %v351
      %v419 = vmin.f32 %v415, %v416
      %v420 = vmin.f32 %v417, %v418
      %v421 = vmin.f32 %v419, %v420
      %v422 = vrot.slane %v421, 4
      %v423 = vmin.f32 %v421, %v422
      %v424 = vrot.slane %v423, 2
      %v425 = vmin.f32 %v423, %v424
      %v426 = vrot.slane %v425, 1
      %v427 = vmin.f32 %v425, %v426
      %v428 = vmax.f32 %v427, 0.0
      %s429 = smul.u32 %s20, 128
      // Predicated region
      $region37: #{tpu_custom_call.1} parent=27 // pred_check
        %p430 = pneg %p203
      $region38: #{tpu_custom_call.1} parent=27 // pred_check_branch
        %432 = sbr.rel (%p430) target = $region40
      $region39: #{tpu_custom_call.1} parent=27 // pred_region
        %s433 = sshra.s32 %s429, 7
        %s434 = sand.u32 %s429, 127
        %s435 = scalar_lea.vmem [#allocation3], %s433
        %436 = vst [vmem:[%s435] sm:$0x1] inf
      $region40: #{tpu_custom_call.1} parent=27 // pred_fallthru
        _
      %s437 = sshra.s32 %s429, 7
      %s438 = sand.u32 %s429, 127
      %s439 = scalar_lea.vmem [#allocation3], %s437
      %v440 = vld [vmem:[%s439] sm:$0x1]
      %v441 = vmin.f32 %v440, %v428
      %442 = vst [vmem:[%s439] sm:$0x1] %v441
      // Predicated region
      $region41: #{tpu_custom_call.1} parent=27 // pred_check
        %p443 = pneg %p204
      $region42: #{tpu_custom_call.1} parent=27 // pred_check_branch
        %445 = sbr.rel (%p443) target = $region44
      $region43: #{tpu_custom_call.1} parent=27 // pred_region
        %v446 = vlaneseq
        %v447 = vshrl.u32 %v446, 7
        %v448 = vadd.s32 %v447, 8
        %v449 = vadd.s32 %v447, 16
        %v450 = vadd.s32 %v447, 24
        %v451 = vadd.s32 %v447, 32
        %v452 = vadd.s32 %v447, 40
        %v453 = vadd.s32 %v447, 48
        %v454 = vadd.s32 %v447, 56
        %s455 = smul.u32 %s19, 64
        %v456 = vstv %s455
        %v457 = vadd.s32 %v447, %v456
        %v458 = vadd.s32 %v448, %v456
        %v459 = vadd.s32 %v449, %v456
        %v460 = vadd.s32 %v450, %v456
        %v461 = vadd.s32 %v451, %v456
        %v462 = vadd.s32 %v452, %v456
        %v463 = vadd.s32 %v453, %v456
        %v464 = vadd.s32 %v454, %v456
        %vm465 = vcmp.lt.s32.totalorder %v457, 64
        %vm466 = vcmp.lt.s32.totalorder %v458, 64
        %vm467 = vcmp.lt.s32.totalorder %v459, 64
        %vm468 = vcmp.lt.s32.totalorder %v460, 64
        %vm469 = vcmp.lt.s32.totalorder %v461, 64
        %vm470 = vcmp.lt.s32.totalorder %v462, 64
        %vm471 = vcmp.lt.s32.totalorder %v463, 64
        %vm472 = vcmp.lt.s32.totalorder %v464, 64
        %v473 = vsel %vm465, %v398, 0.0
        %v474 = vsel %vm466, %v399, 0.0
        %v475 = vsel %vm467, %v400, 0.0
        %v476 = vsel %vm468, %v401, 0.0
        %v477 = vsel %vm469, %v402, 0.0
        %v478 = vsel %vm470, %v403, 0.0
        %v479 = vsel %vm471, %v404, 0.0
        %v480 = vsel %vm472, %v405, 0.0
        %v481 = vsel %vm406, %v473, 0.0
        %v482 = vsel %vm406, %v474, 0.0
        %v483 = vadd.f32 %v481, %v482
        %v484 = vsel %vm406, %v475, 0.0
        %v485 = vadd.f32 %v483, %v484
        %v486 = vsel %vm406, %v476, 0.0
        %v487 = vadd.f32 %v485, %v486
        %v488 = vsel %vm406, %v477, 0.0
        %v489 = vadd.f32 %v487, %v488
        %v490 = vsel %vm406, %v478, 0.0
        %v491 = vadd.f32 %v489, %v490
        %v492 = vsel %vm406, %v479, 0.0
        %v493 = vadd.f32 %v491, %v492
        %v494 = vsel %vm406, %v480, 0.0
        %v495 = vadd.f32 %v493, %v494
        %496 = vadd.xlane.f32.xlu0 %v495
        %v497 = vpop.xlane.xlu0 %496
        %v498 = vrot.slane %v497, 4
        %v499 = vadd.f32 %v497, %v498
        %v500 = vrot.slane %v499, 2
        %v501 = vadd.f32 %v499, %v500
        %v502 = vrot.slane %v501, 1
        %v503 = vadd.f32 %v501, %v502
        %s504 = vtos %v503
        %v505 = vld [vmem:[%s202] sm:$0x1]
        %v506 = vstv %s504
        %v507 = vadd.f32 %v505, %v506
        %vm508 = vcmask 0
        %509 = vst.msk [vmem:[%s202] sm:$0x1] %vm508, %v507
      $region44: #{tpu_custom_call.1} parent=27 // pred_fallthru
        _
      // Predicated region
      $region45: #{tpu_custom_call.1} parent=27 // pred_check
        %p510 = pneg %p203
      $region46: #{tpu_custom_call.1} parent=27 // pred_check_branch
        %512 = sbr.rel (%p510) target = $region48
      $region47: #{tpu_custom_call.1} parent=27 // pred_region
        %v513 = vlaneseq
        %v514 = vand.u32 %v513, 127
        %v515 = vstv %s429
        %v516 = vadd.s32 %v514, %v515
        %vm517 = vcmp.lt.s32.totalorder %v516, 48
        %v518 = vsel %vm517, %v441, 0.0
        %vm519 = vcmask 1040384
        %v520 = vsel %vm519, %v518, 0.0
        %521 = vadd.xlane.f32.xlu0 %v520
        %v522 = vpop.xlane.xlu0 %521
        %v523 = vrot.slane %v522, 4
        %v524 = vadd.f32 %v522, %v523
        %v525 = vrot.slane %v524, 2
        %v526 = vadd.f32 %v524, %v525
        %v527 = vrot.slane %v526, 1
        %v528 = vadd.f32 %v526, %v527
        %s529 = vtos %v528
        %v530 = vld [vmem:[%s202] sm:$0x1]
        %v531 = vstv %s529
        %v532 = vadd.f32 %v530, %v531
        %vm533 = vcmask 0
        %534 = vst.msk [vmem:[%s202] sm:$0x1] %vm533, %v532
      $region48: #{tpu_custom_call.1} parent=27 // pred_fallthru
        _
      %p535 = scmp.lt.s32.totalorder %s18, 1
      %s536 = scalar_select %p535, %s18, 1
      %s537 = scalar_lea.vmem %s2, %s536
      // Predicated region
      $region49: #{tpu_custom_call.1} parent=27 // pred_check
        %p538 = pneg %p106
      $region50: #{tpu_custom_call.1} parent=27 // pred_check_branch
        %540 = sbr.rel (%p538) target = $region52
      $region51: #{tpu_custom_call.1} parent=27 // pred_region
        _
      $region52: #{tpu_custom_call.1} parent=27 // pred_fallthru
        _
    $region28: #{tpu_custom_call.1} parent=5 // pred_fallthru
      _
    %p541 = scmp.le.s32.totalorder 2, %s8
    // Predicated region
    $region53: #{tpu_custom_call.1} parent=5 // pred_check
      %p542 = pneg %p541
    $region54: #{tpu_custom_call.1} parent=5 // pred_check_branch
      %544 = sbr.rel (%p542) target = $region56
    $region55: #{tpu_custom_call.1} parent=5 // pred_region
      %s545 = ssub.s32 %s8, 2
      // Predicated region
      $region57: #{tpu_custom_call.1} parent=55 // pred_check
        %p546 = pneg %p112
      $region58: #{tpu_custom_call.1} parent=55 // pred_check_branch
        %548 = sbr.rel (%p546) target = $region60
      $region59: #{tpu_custom_call.1} parent=55 // pred_region
        %p549 = scmp.lt.s32.totalorder %s21, 1
        %s550 = scalar_select %p549, %s21, 1
        %s551 = scalar_lea.vmem %s2, %s550
      $region60: #{tpu_custom_call.1} parent=55 // pred_fallthru
        _
    $region56: #{tpu_custom_call.1} parent=5 // pred_fallthru
      _
  $region6: #{tpu_custom_call.1} parent=0 // loop_footer
    %s12 = sadd.s32 1, %s8
  $region7: #{tpu_custom_call.1} parent=0 // loop_footer_branch
    %7 = sbr.rel target = $region3
  $region8: #{tpu_custom_call.1} parent=0 // loop_exit
    _

</llo_original>
